<compile_context>
chip_gen: v7x
topology: tpu7x:2x2x1
jax: 0.10.0
libtpu: 0.0.40
codegen_flags: <defaults>
</compile_context>

<pallas_src>
import functools

import jax
import jax.numpy as jnp
from jax.experimental import pallas as pl
from jax.experimental.pallas import tpu as pltpu

SEED_DIM = 100
LABEL_DIM = 10
IN_DIM = SEED_DIM + LABEL_DIM   # 110
HID_DIM = 200
OUT_DIM = 784

MAX_BLOCK_M = 512               # MXU-height batch tile cap for large batches
LN_EPS = 1e-5
LRELU_SLOPE = 0.02


def _round_up(n, m):
    return ((n + m - 1) // m) * m


def _cgan_generator_kernel(seed_ref, label_ref, w1a_ref, w1b_ref, vec_ref,
                           w2_ref, b2_ref, out_ref):
    """Fused Linear -> LeakyReLU -> LayerNorm -> Linear -> Sigmoid.

    Shapes (per grid step):
      seed_ref : (block_m, 100)
      label_ref: (block_m, 10)
      w1a_ref  : (100, 200)   W1 rows for the seed features
      w1b_ref  : (10, 200)    W1 rows for the label features
      vec_ref  : (8, 200)     row0=b1, row1=gamma, row2=beta (f32)
      w2_ref   : (200, 784)
      b2_ref   : (1, 784)     f32
      out_ref  : (block_m, 784)
    """
    w_dtype = w1a_ref.dtype
    vec = vec_ref[...]
    b1 = vec[0:1, :]
    gamma = vec[1:2, :]
    beta = vec[2:3, :]

    # Linear(110 -> 200), split into two dots so the caller never has to
    # materialize a concatenated / padded input.  f32 accumulation on the MXU.
    h = jnp.dot(seed_ref[...].astype(w_dtype), w1a_ref[...],
                preferred_element_type=jnp.float32)
    h = h + jnp.dot(label_ref[...].astype(w_dtype), w1b_ref[...],
                    preferred_element_type=jnp.float32)
    h = h + b1

    # LeakyReLU(0.02): single vmax + mul (slope < 1 so max picks the branch).
    h = jnp.maximum(h, LRELU_SLOPE * h)

    # LayerNorm over the 200 features, one-pass fused statistics
    # (saves one XLU reduction vs the two-pass form).
    inv_n = jnp.float32(1.0 / HID_DIM)
    s1 = jnp.sum(h, axis=-1, keepdims=True)
    s2 = jnp.sum(h * h, axis=-1, keepdims=True)
    mean = s1 * inv_n
    var = s2 * inv_n - mean * mean
    h = (h - mean) * jax.lax.rsqrt(var + LN_EPS)
    h = h * gamma + beta

    # Linear(200 -> 784) + Sigmoid on the 784 real lanes only (EUP path).
    o = jnp.dot(h.astype(w_dtype), w2_ref[...],
                preferred_element_type=jnp.float32) + b2_ref[...]
    out_ref[...] = jax.nn.sigmoid(o).astype(out_ref.dtype)


def _choose_block_m(batch):
    if batch <= 8:
        # Single full-array block: block dims equal the array dims -> always
        # a legal layout, no partial-block handling needed.
        return batch
    # Aim for >= 2 grid steps so dimension_semantics=("parallel",) can use
    # both TensorCores on v7x, while keeping tiles large (per-step overhead
    # ~0.35us, and 512-row output tiles sit near the HBM roofline).
    return max(8, min(MAX_BLOCK_M, _round_up(pl.cdiv(batch, 2), 8)))


@functools.partial(jax.jit, static_argnames=("out_dtype",))
def _forward_batched(seed, label, prepared_params, out_dtype=jnp.float32):
    """seed: (B, 100), label: (B, 10) -> (B, 784)."""
    w1a, w1b, vec, w2, b2 = prepared_params
    batch = seed.shape[0]

    block_m = _choose_block_m(batch)
    grid = (pl.cdiv(batch, block_m),)

    return pl.pallas_call(
        _cgan_generator_kernel,
        out_shape=jax.ShapeDtypeStruct((batch, OUT_DIM), out_dtype),
        grid=grid,
        in_specs=[
            pl.BlockSpec((block_m, SEED_DIM), lambda i: (i, 0)),    # seed
            pl.BlockSpec((block_m, LABEL_DIM), lambda i: (i, 0)),   # label
            pl.BlockSpec((SEED_DIM, HID_DIM), lambda i: (0, 0)),    # W1[:100]
            pl.BlockSpec((LABEL_DIM, HID_DIM), lambda i: (0, 0)),   # W1[100:]
            pl.BlockSpec((8, HID_DIM), lambda i: (0, 0)),           # b1/gamma/beta
            pl.BlockSpec((HID_DIM, OUT_DIM), lambda i: (0, 0)),     # W2
            pl.BlockSpec((1, OUT_DIM), lambda i: (0, 0)),           # b2
        ],
        out_specs=pl.BlockSpec((block_m, OUT_DIM), lambda i: (i, 0)),
        compiler_params=pltpu.CompilerParams(
            dimension_semantics=("parallel",)),
    )(seed, label, w1a, w1b, vec, w2, b2)


def cgan_generator_forward(seed, label, prepared_params, out_dtype=jnp.float32):
    """Accepts (100,)/(10,) like the PyTorch module, or batched (B,100)/(B,10)."""
    unbatched = seed.ndim == 1
    if unbatched:
        seed = seed[None, :]
        label = label[None, :]
    out = _forward_batched(seed, label, prepared_params, out_dtype=out_dtype)
    return out[0] if unbatched else out


def init_params(key):
    """Parameters in (in_features, out_features) layout, matching the module."""
    k1, k2, k3, k4 = jax.random.split(key, 4)
    lim1 = 1.0 / jnp.sqrt(jnp.float32(IN_DIM))
    w1 = jax.random.uniform(k1, (IN_DIM, HID_DIM), jnp.float32, -lim1, lim1)
    b1 = jax.random.uniform(k2, (1, HID_DIM), jnp.float32, -lim1, lim1)
    gamma = jnp.ones((1, HID_DIM), jnp.float32)     # LayerNorm defaults
    beta = jnp.zeros((1, HID_DIM), jnp.float32)
    lim2 = 1.0 / jnp.sqrt(jnp.float32(HID_DIM))
    w2 = jax.random.uniform(k3, (HID_DIM, OUT_DIM), jnp.float32, -lim2, lim2)
    b2 = jax.random.uniform(k4, (1, OUT_DIM), jnp.float32, -lim2, lim2)
    return w1, b1, gamma, beta, w2, b2


def prepare_params(params, weight_dtype=jnp.bfloat16):
    """One-time weight packing.

    weight_dtype=jnp.bfloat16 (default) is MXU-native and halves weight DMA;
    use jnp.float32 when exact (2e-5) parity with the f32 reference is needed.
    Biases / LayerNorm affine stay in f32 (added to f32 accumulators).
    """
    w1, b1, gamma, beta, w2, b2 = params

    w1a = w1[:SEED_DIM].astype(weight_dtype)        # (100, 200)
    w1b = w1[SEED_DIM:].astype(weight_dtype)        # (10, 200)

    # Pack b1 / gamma / beta into one (8, HID_DIM) f32 slab -> one small DMA.
    vec = jnp.zeros((8, HID_DIM), jnp.float32)
    vec = vec.at[0].set(b1.reshape(-1))
    vec = vec.at[1].set(gamma.reshape(-1))
    vec = vec.at[2].set(beta.reshape(-1))

    w2p = w2.astype(weight_dtype)                   # (200, 784)
    b2p = b2.reshape(1, OUT_DIM).astype(jnp.float32)

    return w1a, w1b, vec, w2p, b2p


def reference_forward(seed, label, params):
    """Pure-JAX f32 reference (batched) for correctness checking."""
    w1, b1, gamma, beta, w2, b2 = params
    x = jnp.concatenate([seed, label], axis=-1)
    h = x @ w1 + b1
    h = jnp.where(h >= 0, h, LRELU_SLOPE * h)
    mean = jnp.mean(h, axis=-1, keepdims=True)
    var = jnp.mean((h - mean) ** 2, axis=-1, keepdims=True)
    h = (h - mean) / jnp.sqrt(var + LN_EPS) * gamma + beta
    o = h @ w2 + b2
    return jax.nn.sigmoid(o)


if __name__ == "__main__":
    key = jax.random.PRNGKey(0)
    kp, ks, kl = jax.random.split(key, 3)

    params = init_params(kp)

    # Small batched demo: 16 samples -> grid of 2 batch tiles of 8.
    B = 16
    seeds = jax.random.normal(ks, (B, SEED_DIM), jnp.float32)
    label_ids = jax.random.randint(kl, (B,), 0, LABEL_DIM)
    labels = jax.nn.one_hot(label_ids, LABEL_DIM, dtype=jnp.float32)

    ref = reference_forward(seeds, labels, params)

    # Default bf16-weight path (f32 accumulation): loose tolerance.
    params_bf16 = prepare_params(params)                       # bfloat16 weights
    out_bf16 = cgan_generator_forward(seeds, labels, params_bf16)
    out_bf16 = jax.block_until_ready(out_bf16)
    assert out_bf16.shape == (B, OUT_DIM)
    assert jnp.max(jnp.abs(out_bf16 - ref)) < 2e-2

    # f32-weight path: exact parity with the reference.
    params_f32 = prepare_params(params, weight_dtype=jnp.float32)
    out_f32 = cgan_generator_forward(seeds, labels, params_f32)
    out_f32 = jax.block_until_ready(out_f32)
    assert jnp.max(jnp.abs(out_f32 - ref)) < 2e-5

    # Unbatched call mirroring the PyTorch module's forward(seed, label).
    out1 = cgan_generator_forward(seeds[0], labels[0], params_f32)
    out1 = jax.block_until_ready(out1)
    assert out1.shape == (OUT_DIM,)
    assert jnp.max(jnp.abs(out1 - ref[0])) < 2e-5

    # TODO(synk): train()/Adam optimiser and plot_progress are training-side
    # utilities, intentionally not part of this forward-pass kernel.
    print("KERNEL_OK")
</pallas_src>

<mosaic_0001>
module attributes {stable_mosaic.version = 11 : i64} {
  func.func @_cgan_generator_kernel(%arg0: i32, %arg1: memref<8x100xf32, #tpu.memory_space<vmem>>, %arg2: memref<8x10xf32, #tpu.memory_space<vmem>>, %arg3: memref<100x200xbf16, #tpu.memory_space<vmem>>, %arg4: memref<10x200xbf16, #tpu.memory_space<vmem>>, %arg5: memref<8x200xf32, #tpu.memory_space<vmem>>, %arg6: memref<200x784xbf16, #tpu.memory_space<vmem>>, %arg7: memref<1x784xf32, #tpu.memory_space<vmem>>, %arg8: memref<8x784xf32, #tpu.memory_space<vmem>>) attributes {dimension_semantics = [#tpu.dimension_semantics<parallel>], iteration_bounds = array<i64: 2>, scalar_prefetch = 0 : i64, scratch_operands = 0 : i64, tpu.core_type = #tpu.core_type<tc>, window_params = [{transform_indices = @transform_0, window_bounds = array<i64: 8, 100>}, {transform_indices = @transform_1, window_bounds = array<i64: 8, 10>}, {pipeline_mode = #tpu.pipeline_mode<synchronous>, transform_indices = @transform_2, window_bounds = array<i64: 100, 200>}, {pipeline_mode = #tpu.pipeline_mode<synchronous>, transform_indices = @transform_3, window_bounds = array<i64: 10, 200>}, {pipeline_mode = #tpu.pipeline_mode<synchronous>, transform_indices = @transform_4, window_bounds = array<i64: 8, 200>}, {pipeline_mode = #tpu.pipeline_mode<synchronous>, transform_indices = @transform_5, window_bounds = array<i64: 200, 784>}, {pipeline_mode = #tpu.pipeline_mode<synchronous>, transform_indices = @transform_6, window_bounds = array<i64: 1, 784>}, {transform_indices = @transform_7, window_bounds = array<i64: 8, 784>}]} {
    %c0 = arith.constant 0 : index
    %c0_0 = arith.constant 0 : index
    %0 = vector.load %arg5[%c0, %c0_0] : memref<8x200xf32, #tpu.memory_space<vmem>>, vector<8x200xf32>
    %1 = vector.extract_strided_slice %0 {offsets = [0, 0], sizes = [1, 200], strides = [1, 1]} : vector<8x200xf32> to vector<1x200xf32>
    %2 = vector.extract_strided_slice %0 {offsets = [1, 0], sizes = [1, 200], strides = [1, 1]} : vector<8x200xf32> to vector<1x200xf32>
    %3 = vector.extract_strided_slice %0 {offsets = [2, 0], sizes = [1, 200], strides = [1, 1]} : vector<8x200xf32> to vector<1x200xf32>
    %c0_1 = arith.constant 0 : index
    %c0_2 = arith.constant 0 : index
    %4 = vector.load %arg1[%c0_1, %c0_2] : memref<8x100xf32, #tpu.memory_space<vmem>>, vector<8x100xf32>
    %5 = arith.truncf %4 : vector<8x100xf32> to vector<8x100xbf16>
    %c0_3 = arith.constant 0 : index
    %c0_4 = arith.constant 0 : index
    %6 = vector.load %arg3[%c0_3, %c0_4] : memref<100x200xbf16, #tpu.memory_space<vmem>>, vector<100x200xbf16>
    %cst = arith.constant dense<0.000000e+00> : vector<8x200xf32>
    %7 = tpu.matmul %5, %6, %cst {dimension_numbers = #tpu.dot_dimension_numbers<[1], [0], [0], [1], [0, 0, 1, 1], [], []>} : vector<8x100xbf16>, vector<100x200xbf16>, vector<8x200xf32> -> vector<8x200xf32>
    %c0_5 = arith.constant 0 : index
    %c0_6 = arith.constant 0 : index
    %8 = vector.load %arg2[%c0_5, %c0_6] : memref<8x10xf32, #tpu.memory_space<vmem>>, vector<8x10xf32>
    %9 = arith.truncf %8 : vector<8x10xf32> to vector<8x10xbf16>
    %c0_7 = arith.constant 0 : index
    %c0_8 = arith.constant 0 : index
    %10 = vector.load %arg4[%c0_7, %c0_8] : memref<10x200xbf16, #tpu.memory_space<vmem>>, vector<10x200xbf16>
    %cst_9 = arith.constant dense<0.000000e+00> : vector<8x200xf32>
    %11 = tpu.matmul %9, %10, %cst_9 {dimension_numbers = #tpu.dot_dimension_numbers<[1], [0], [0], [1], [0, 0, 1, 1], [], []>} : vector<8x10xbf16>, vector<10x200xbf16>, vector<8x200xf32> -> vector<8x200xf32>
    %12 = arith.addf %7, %11 : vector<8x200xf32>
    %13 = vector.broadcast %1 : vector<1x200xf32> to vector<8x200xf32>
    %14 = arith.addf %12, %13 : vector<8x200xf32>
    %cst_10 = arith.constant 2.000000e-02 : f32
    %15 = vector.broadcast %cst_10 : f32 to vector<8x200xf32>
    %16 = arith.mulf %15, %14 : vector<8x200xf32>
    %17 = arith.maximumf %14, %16 : vector<8x200xf32>
    %cst_11 = arith.constant dense<0.000000e+00> : vector<8xf32>
    %18 = vector.multi_reduction <add>, %17, %cst_11 [1] : vector<8x200xf32> to vector<8xf32>
    %19 = vector.shape_cast %18 : vector<8xf32> to vector<8x1xf32>
    %20 = arith.mulf %17, %17 : vector<8x200xf32>
    %cst_12 = arith.constant dense<0.000000e+00> : vector<8xf32>
    %21 = vector.multi_reduction <add>, %20, %cst_12 [1] : vector<8x200xf32> to vector<8xf32>
    %22 = vector.shape_cast %21 : vector<8xf32> to vector<8x1xf32>
    %cst_13 = arith.constant 5.000000e-03 : f32
    %23 = vector.broadcast %cst_13 : f32 to vector<8x1xf32>
    %24 = arith.mulf %19, %23 : vector<8x1xf32>
    %cst_14 = arith.constant 5.000000e-03 : f32
    %25 = vector.broadcast %cst_14 : f32 to vector<8x1xf32>
    %26 = arith.mulf %22, %25 : vector<8x1xf32>
    %27 = arith.mulf %24, %24 : vector<8x1xf32>
    %28 = arith.subf %26, %27 : vector<8x1xf32>
    %29 = vector.broadcast %24 : vector<8x1xf32> to vector<8x200xf32>
    %30 = arith.subf %17, %29 : vector<8x200xf32>
    %cst_15 = arith.constant 9.99999974E-6 : f32
    %31 = vector.broadcast %cst_15 : f32 to vector<8x1xf32>
    %32 = arith.addf %28, %31 : vector<8x1xf32>
    %33 = math.rsqrt %32 : vector<8x1xf32>
    %34 = vector.broadcast %33 : vector<8x1xf32> to vector<8x200xf32>
    %35 = arith.mulf %30, %34 : vector<8x200xf32>
    %36 = vector.broadcast %2 : vector<1x200xf32> to vector<8x200xf32>
    %37 = arith.mulf %35, %36 : vector<8x200xf32>
    %38 = vector.broadcast %3 : vector<1x200xf32> to vector<8x200xf32>
    %39 = arith.addf %37, %38 : vector<8x200xf32>
    %40 = arith.truncf %39 : vector<8x200xf32> to vector<8x200xbf16>
    %c0_16 = arith.constant 0 : index
    %c0_17 = arith.constant 0 : index
    %41 = vector.load %arg6[%c0_16, %c0_17] : memref<200x784xbf16, #tpu.memory_space<vmem>>, vector<200x784xbf16>
    %cst_18 = arith.constant dense<0.000000e+00> : vector<8x784xf32>
    %42 = tpu.matmul %40, %41, %cst_18 {dimension_numbers = #tpu.dot_dimension_numbers<[1], [0], [0], [1], [0, 0, 1, 1], [], []>} : vector<8x200xbf16>, vector<200x784xbf16>, vector<8x784xf32> -> vector<8x784xf32>
    %c0_19 = arith.constant 0 : index
    %c0_20 = arith.constant 0 : index
    %43 = vector.load %arg7[%c0_19, %c0_20] : memref<1x784xf32, #tpu.memory_space<vmem>>, vector<1x784xf32>
    %44 = vector.broadcast %43 : vector<1x784xf32> to vector<8x784xf32>
    %45 = arith.addf %42, %44 : vector<8x784xf32>
    %46 = arith.negf %45 : vector<8x784xf32>
    %47 = math.exp %46 : vector<8x784xf32>
    %cst_21 = arith.constant 1.000000e+00 : f32
    %48 = vector.broadcast %cst_21 : f32 to vector<8x784xf32>
    %49 = arith.addf %48, %47 : vector<8x784xf32>
    %50 = arith.divf %48, %49 : vector<8x784xf32>
    %c0_22 = arith.constant 0 : index
    %c0_23 = arith.constant 0 : index
    %51 = vector.load %arg8[%c0_22, %c0_23] : memref<8x784xf32, #tpu.memory_space<vmem>>, vector<8x784xf32>
    tpu.vector_store %arg8[%c0_22, %c0_23], %50 {strides = array<i32>} : memref<8x784xf32, #tpu.memory_space<vmem>>, vector<8x784xf32>,
    return
  }
  func.func @transform_0(%arg0: i32) -> (i32, i32) {
    %c0_i32 = arith.constant 0 : i32
    %c0_i32_0 = arith.constant 0 : i32
    return %arg0, %c0_i32 : i32, i32
  }
  func.func @transform_1(%arg0: i32) -> (i32, i32) {
    %c0_i32 = arith.constant 0 : i32
    %c0_i32_0 = arith.constant 0 : i32
    return %arg0, %c0_i32 : i32, i32
  }
  func.func @transform_2(%arg0: i32) -> (i32, i32) {
    %c0_i32 = arith.constant 0 : i32
    %c0_i32_0 = arith.constant 0 : i32
    %c0_i32_1 = arith.constant 0 : i32
    return %c0_i32, %c0_i32_0 : i32, i32
  }
  func.func @transform_3(%arg0: i32) -> (i32, i32) {
    %c0_i32 = arith.constant 0 : i32
    %c0_i32_0 = arith.constant 0 : i32
    %c0_i32_1 = arith.constant 0 : i32
    return %c0_i32, %c0_i32_0 : i32, i32
  }
  func.func @transform_4(%arg0: i32) -> (i32, i32) {
    %c0_i32 = arith.constant 0 : i32
    %c0_i32_0 = arith.constant 0 : i32
    %c0_i32_1 = arith.constant 0 : i32
    return %c0_i32, %c0_i32_0 : i32, i32
  }
  func.func @transform_5(%arg0: i32) -> (i32, i32) {
    %c0_i32 = arith.constant 0 : i32
    %c0_i32_0 = arith.constant 0 : i32
    %c0_i32_1 = arith.constant 0 : i32
    return %c0_i32, %c0_i32_0 : i32, i32
  }
  func.func @transform_6(%arg0: i32) -> (i32, i32) {
    %c0_i32 = arith.constant 0 : i32
    %c0_i32_0 = arith.constant 0 : i32
    %c0_i32_1 = arith.constant 0 : i32
    return %c0_i32, %c0_i32_0 : i32, i32
  }
  func.func @transform_7(%arg0: i32) -> (i32, i32) {
    %c0_i32 = arith.constant 0 : i32
    %c0_i32_0 = arith.constant 0 : i32
    return %arg0, %c0_i32 : i32, i32
  }
}

</mosaic_0001>

<llo_original>
// kernel: _forward_batched.1
$region0: #{_forward_batched.1}
  #allocation0 [shape = 'u32[]', space=smem, size = 0x4, offset = 0x4, fixed_abs, tag = 'smem constant byte address 0x4 - core index']
  #allocation1 [shape = 'u32[144,128]{1,0:T(1,128)}', space=vmem, size = 0x12000, scoped, tag = 'internal scratch']
  %s0 = inlined_call_operand.vmem [shape: f32[16,100], index: 0, kind: input, shape index: {}]
  %s1 = inlined_call_operand.vmem [shape: f32[16,10], index: 1, kind: input, shape index: {}]
  %s2 = inlined_call_operand.vmem [shape: bf16[100,200], index: 2, kind: input, shape index: {}]
  %s3 = inlined_call_operand.vmem [shape: bf16[10,200], index: 3, kind: input, shape index: {}]
  %s4 = inlined_call_operand.vmem [shape: f32[8,200], index: 4, kind: input, shape index: {}]
  %s5 = inlined_call_operand.hbm [shape: bf16[200,784], index: 5, kind: input, shape index: {}]
  %s6 = inlined_call_operand.vmem [shape: f32[1,784], index: 6, kind: input, shape index: {}]
  %s7 = inlined_call_operand.hbm [shape: f32[16,784], index: 7, kind: output, shape index: {}]
  %s8 = sld [smem:[#allocation0]]
  $region65: #{_forward_batched.1} parent=0
    _
  %s10 = ssub.s32 1, %s8
  %s11 = scalar_select 0, %s10, %s8
  $region1: #{_forward_batched.1} parent=0
    #allocation2 [shape = 'u8[358400]{0}', space=vmem, size = 0x57800, scoped, tag = 'input window, operand 5, single buffered']
    #allocation3 [shape = 's32[2]{0}', space=sflag, size = 0x8, scoped, tag = 'scoped memory for _forward_batched.1']
    #allocation4 [shape = 's32[2]{0}', space=sflag, size = 0x8, scoped, tag = 'scoped memory for _forward_batched.1']
    #allocation5 [shape = 'u8[57344]{0}', space=vmem, size = 0xe000, scoped, tag = 'output window, operand 0']
    %12 = vsyncpa [#allocation3], 0
    %13 = vsyncpa [#allocation4], 0
    %s14 = scalar_lea.sflag [#allocation4], 1
    %15 = vsyncpa %s14, 0
    loop: start=0, step=1, limit=4
    $region2: #{_forward_batched.1} parent=1 // loop_pre_header
      _
    $region3: #{_forward_batched.1} parent=1 // loop_header
      %s17 = sphi 0, %s21
      %p18 = scmp.ge.s32.totalorder %s17, 4
      %s27 = sphi 0, %s29
      %s30 = sphi 0, %s27
      %s31 = sphi 0, %s30
      %s47 = sphi 0, %s31
      %s53 = sphi 0, %s55
      %s56 = sphi 0, %s53
      %s57 = sphi 0, %s56
      %s73 = sphi 0, %s57
      %s77 = sphi 0, %s77
      %s79 = sphi 0, %s77
      %s80 = sphi 0, %s79
      %s94 = sphi 0, %s80
      %s98 = sphi 0, %s98
      %s100 = sphi 0, %s98
      %s101 = sphi 0, %s100
      %s115 = sphi 0, %s101
      %s119 = sphi 0, %s119
      %s121 = sphi 0, %s119
      %s122 = sphi 0, %s121
      %s136 = sphi 0, %s122
      %s140 = sphi 0, %s140
      %s142 = sphi 0, %s140
      %s143 = sphi 0, %s142
      %s157 = sphi 0, %s143
      %s161 = sphi 0, %s161
      %s163 = sphi 0, %s161
      %s164 = sphi 0, %s163
      %s178 = sphi 0, %s164
      %s184 = sphi 0, %s186
      %s187 = sphi 0, %s184
      %s188 = sphi 0, %s187
      %s204 = sphi 0, %s188
    $region4: #{_forward_batched.1} parent=1 // loop_header_branch
      %20 = sbr.rel (%p18) target = $region8
    $region5: #{_forward_batched.1} parent=1 // loop_body
      %s22 = ssub.s32 %s17, 1
      %s23 = ssub.s32 %s17, 2
      %s24 = sadd.s32 %s17, 1
      %s25 = ssub.s32 %s17, %s24
      %p26 = scmp.eq.s32.totalorder %s25, 0
      %s28 = sadd.s32 %s27, 1
      %s29 = scalar_select %p26, %s27, %s28
      %p32 = pneg %p26
      %p33 = scmp.eq.s32.totalorder %s17, 1
      %p34 = por %p32, %p33
      %p35 = scmp.ne.s32.totalorder %s27, %s30
      %p36 = scmp.eq.s32.totalorder %s17, 0
      %p37 = por %p35, %p36
      %p38 = scmp.ne.s32.totalorder %s27, %s30
      %p39 = scmp.eq.s32.totalorder %s22, 1
      %p40 = por %p38, %p39
      %p41 = scmp.ne.s32.totalorder %s30, %s31
      %p42 = scmp.eq.s32.totalorder %s22, 0
      %p43 = por %p41, %p42
      %p44 = scmp.ne.s32.totalorder %s30, %s31
      %p45 = scmp.eq.s32.totalorder %s23, 1
      %p46 = por %p44, %p45
      %p48 = scmp.ne.s32.totalorder %s31, %s47
      %p49 = scmp.eq.s32.totalorder %s23, 0
      %p50 = por %p48, %p49
      %s51 = ssub.s32 %s17, %s24
      %p52 = scmp.eq.s32.totalorder %s51, 0
      %s54 = sadd.s32 %s53, 1
      %s55 = scalar_select %p52, %s53, %s54
      %p58 = pneg %p52
      %p59 = scmp.eq.s32.totalorder %s17, 1
      %p60 = por %p58, %p59
      %p61 = scmp.ne.s32.totalorder %s53, %s56
      %p62 = scmp.eq.s32.totalorder %s17, 0
      %p63 = por %p61, %p62
      %p64 = scmp.ne.s32.totalorder %s53, %s56
      %p65 = scmp.eq.s32.totalorder %s22, 1
      %p66 = por %p64, %p65
      %p67 = scmp.ne.s32.totalorder %s56, %s57
      %p68 = scmp.eq.s32.totalorder %s22, 0
      %p69 = por %p67, %p68
      %p70 = scmp.ne.s32.totalorder %s56, %s57
      %p71 = scmp.eq.s32.totalorder %s23, 1
      %p72 = por %p70, %p71
      %p74 = scmp.ne.s32.totalorder %s57, %s73
      %p75 = scmp.eq.s32.totalorder %s23, 0
      %p76 = por %p74, %p75
      %s78 = sadd.s32 %s77, 1
      %p81 = scmp.eq.s32.totalorder %s17, 1
      %p82 = scmp.ne.s32.totalorder %s77, %s79
      %p83 = scmp.eq.s32.totalorder %s17, 0
      %p84 = por %p82, %p83
      %p85 = scmp.ne.s32.totalorder %s77, %s79
      %p86 = scmp.eq.s32.totalorder %s22, 1
      %p87 = por %p85, %p86
      %p88 = scmp.ne.s32.totalorder %s79, %s80
      %p89 = scmp.eq.s32.totalorder %s22, 0
      %p90 = por %p88, %p89
      %p91 = scmp.ne.s32.totalorder %s79, %s80
      %p92 = scmp.eq.s32.totalorder %s23, 1
      %p93 = por %p91, %p92
      %p95 = scmp.ne.s32.totalorder %s80, %s94
      %p96 = scmp.eq.s32.totalorder %s23, 0
      %p97 = por %p95, %p96
      %s99 = sadd.s32 %s98, 1
      %p102 = scmp.eq.s32.totalorder %s17, 1
      %p103 = scmp.ne.s32.totalorder %s98, %s100
      %p104 = scmp.eq.s32.totalorder %s17, 0
      %p105 = por %p103, %p104
      %p106 = scmp.ne.s32.totalorder %s98, %s100
      %p107 = scmp.eq.s32.totalorder %s22, 1
      %p108 = por %p106, %p107
      %p109 = scmp.ne.s32.totalorder %s100, %s101
      %p110 = scmp.eq.s32.totalorder %s22, 0
      %p111 = por %p109, %p110
      %p112 = scmp.ne.s32.totalorder %s100, %s101
      %p113 = scmp.eq.s32.totalorder %s23, 1
      %p114 = por %p112, %p113
      %p116 = scmp.ne.s32.totalorder %s101, %s115
      %p117 = scmp.eq.s32.totalorder %s23, 0
      %p118 = por %p116, %p117
      %s120 = sadd.s32 %s119, 1
      %p123 = scmp.eq.s32.totalorder %s17, 1
      %p124 = scmp.ne.s32.totalorder %s119, %s121
      %p125 = scmp.eq.s32.totalorder %s17, 0
      %p126 = por %p124, %p125
      %p127 = scmp.ne.s32.totalorder %s119, %s121
      %p128 = scmp.eq.s32.totalorder %s22, 1
      %p129 = por %p127, %p128
      %p130 = scmp.ne.s32.totalorder %s121, %s122
      %p131 = scmp.eq.s32.totalorder %s22, 0
      %p132 = por %p130, %p131
      %p133 = scmp.ne.s32.totalorder %s121, %s122
      %p134 = scmp.eq.s32.totalorder %s23, 1
      %p135 = por %p133, %p134
      %p137 = scmp.ne.s32.totalorder %s122, %s136
      %p138 = scmp.eq.s32.totalorder %s23, 0
      %p139 = por %p137, %p138
      %s141 = sadd.s32 %s140, 1
      %p144 = scmp.eq.s32.totalorder %s17, 1
      %p145 = scmp.ne.s32.totalorder %s140, %s142
      %p146 = scmp.eq.s32.totalorder %s17, 0
      %p147 = por %p145, %p146
      %p148 = scmp.ne.s32.totalorder %s140, %s142
      %p149 = scmp.eq.s32.totalorder %s22, 1
      %p150 = por %p148, %p149
      %p151 = scmp.ne.s32.totalorder %s142, %s143
      %p152 = scmp.eq.s32.totalorder %s22, 0
      %p153 = por %p151, %p152
      %p154 = scmp.ne.s32.totalorder %s142, %s143
      %p155 = scmp.eq.s32.totalorder %s23, 1
      %p156 = por %p154, %p155
      %p158 = scmp.ne.s32.totalorder %s143, %s157
      %p159 = scmp.eq.s32.totalorder %s23, 0
      %p160 = por %p158, %p159
      %s162 = sadd.s32 %s161, 1
      %p165 = scmp.eq.s32.totalorder %s17, 1
      %p166 = scmp.ne.s32.totalorder %s161, %s163
      %p167 = scmp.eq.s32.totalorder %s17, 0
      %p168 = por %p166, %p167
      %p169 = scmp.ne.s32.totalorder %s161, %s163
      %p170 = scmp.eq.s32.totalorder %s22, 1
      %p171 = por %p169, %p170
      %p172 = scmp.ne.s32.totalorder %s163, %s164
      %p173 = scmp.eq.s32.totalorder %s22, 0
      %p174 = por %p172, %p173
      %p175 = scmp.ne.s32.totalorder %s163, %s164
      %p176 = scmp.eq.s32.totalorder %s23, 1
      %p177 = por %p175, %p176
      %p179 = scmp.ne.s32.totalorder %s164, %s178
      %p180 = scmp.eq.s32.totalorder %s23, 0
      %p181 = por %p179, %p180
      %s182 = ssub.s32 %s17, %s24
      %p183 = scmp.eq.s32.totalorder %s182, 0
      %s185 = sadd.s32 %s184, 1
      %s186 = scalar_select %p183, %s184, %s185
      %p189 = pneg %p183
      %p190 = scmp.eq.s32.totalorder %s17, 1
      %p191 = por %p189, %p190
      %p192 = scmp.ne.s32.totalorder %s184, %s187
      %p193 = scmp.eq.s32.totalorder %s17, 0
      %p194 = por %p192, %p193
      %p195 = scmp.ne.s32.totalorder %s184, %s187
      %p196 = scmp.eq.s32.totalorder %s22, 1
      %p197 = por %p195, %p196
      %p198 = scmp.ne.s32.totalorder %s187, %s188
      %p199 = scmp.eq.s32.totalorder %s22, 0
      %p200 = por %p198, %p199
      %p201 = scmp.ne.s32.totalorder %s187, %s188
      %p202 = scmp.eq.s32.totalorder %s23, 1
      %p203 = por %p201, %p202
      %p205 = scmp.ne.s32.totalorder %s188, %s204
      %p206 = scmp.eq.s32.totalorder %s23, 0
      %p207 = por %p205, %p206
      %p208 = scmp.le.s32.totalorder 1, %s17
      %p209 = scmp.lt.s32.totalorder %s17, 3
      %p210 = pnand %p208, %p209
      %p211 = pneg %p210
      // Predicated region
      $region9: #{_forward_batched.1} parent=5 // pred_check
        _
      $region10: #{_forward_batched.1} parent=5 // pred_check_branch
        %213 = sbr.rel (%p210) target = $region12
      $region11: #{_forward_batched.1} parent=5 // pred_region
        %s214 = ssub.s32 %s17, 1
        // Predicated region
        $region13: #{_forward_batched.1} parent=11 // pred_check
          %p215 = pneg %p90
        $region14: #{_forward_batched.1} parent=11 // pred_check_branch
          %217 = sbr.rel (%p215) target = $region16
        $region15: #{_forward_batched.1} parent=11 // pred_region
          _
        $region16: #{_forward_batched.1} parent=11 // pred_fallthru
          _
        // Predicated region
        $region17: #{_forward_batched.1} parent=11 // pred_check
          %p218 = pneg %p111
        $region18: #{_forward_batched.1} parent=11 // pred_check_branch
          %220 = sbr.rel (%p218) target = $region20
        $region19: #{_forward_batched.1} parent=11 // pred_region
          _
        $region20: #{_forward_batched.1} parent=11 // pred_fallthru
          _
        // Predicated region
        $region21: #{_forward_batched.1} parent=11 // pred_check
          %p221 = pneg %p132
        $region22: #{_forward_batched.1} parent=11 // pred_check_branch
          %223 = sbr.rel (%p221) target = $region24
        $region23: #{_forward_batched.1} parent=11 // pred_region
          _
        $region24: #{_forward_batched.1} parent=11 // pred_fallthru
          _
        // Predicated region
        $region25: #{_forward_batched.1} parent=11 // pred_check
          %p224 = pneg %p153
        $region26: #{_forward_batched.1} parent=11 // pred_check_branch
          %226 = sbr.rel (%p224) target = $region28
        $region27: #{_forward_batched.1} parent=11 // pred_region
          %s228 = ssub.s32 11200, 11200
          %229 = vsyncadd [#allocation3], %s228
          %s230 = sshll.u32 [#allocation2], 4
          %s231 = int_to_ptr.vmem [resolvable:$true] %s230
          %236 = dma.hbm_to_vmem [thread:$0]  %s5, 11200, %s231, [#allocation3], 448, 448, 28
        $region28: #{_forward_batched.1} parent=11 // pred_fallthru
          _
        // Predicated region
        $region29: #{_forward_batched.1} parent=11 // pred_check
          %p237 = pneg %p174
        $region30: #{_forward_batched.1} parent=11 // pred_check_branch
          %239 = sbr.rel (%p237) target = $region32
        $region31: #{_forward_batched.1} parent=11 // pred_region
          _
        $region32: #{_forward_batched.1} parent=11 // pred_fallthru
          _
      $region12: #{_forward_batched.1} parent=5 // pred_fallthru
        _
      %p240 = scmp.lt.s32.totalorder %s17, 2
      // Predicated region
      $region33: #{_forward_batched.1} parent=5 // pred_check
        %p241 = pneg %p240
      $region34: #{_forward_batched.1} parent=5 // pred_check_branch
        %243 = sbr.rel (%p241) target = $region36
      $region35: #{_forward_batched.1} parent=5 // pred_region
        // Predicated region
        $region37: #{_forward_batched.1} parent=35 // pred_check
          %p244 = pneg %p37
        $region38: #{_forward_batched.1} parent=35 // pred_check_branch
          %246 = sbr.rel (%p244) target = $region40
        $region39: #{_forward_batched.1} parent=35 // pred_region
          %p247 = scmp.lt.s32.totalorder %s17, 1
          %s248 = scalar_select %p247, %s17, 1
          %s249 = smul.addr %s248, 8
          %s250 = scalar_lea.vmem %s0, %s249
        $region40: #{_forward_batched.1} parent=35 // pred_fallthru
          _
        // Predicated region
        $region41: #{_forward_batched.1} parent=35 // pred_check
          %p251 = pneg %p63
        $region42: #{_forward_batched.1} parent=35 // pred_check_branch
          %253 = sbr.rel (%p251) target = $region44
        $region43: #{_forward_batched.1} parent=35 // pred_region
          %p254 = scmp.lt.s32.totalorder %s17, 1
          %s255 = scalar_select %p254, %s17, 1
          %s256 = smul.addr %s255, 8
          %s257 = scalar_lea.vmem %s1, %s256
        $region44: #{_forward_batched.1} parent=35 // pred_fallthru
          _
      $region36: #{_forward_batched.1} parent=5 // pred_fallthru
        _
      %p258 = scmp.le.s32.totalorder 1, %s17
      %p259 = scmp.lt.s32.totalorder %s17, 3
      %p260 = pnand %p258, %p259
      %p261 = pneg %p260
      // Predicated region
      $region45: #{_forward_batched.1} parent=5 // pred_check
        _
      $region46: #{_forward_batched.1} parent=5 // pred_check_branch
        %263 = sbr.rel (%p260) target = $region48
      $region47: #{_forward_batched.1} parent=5 // pred_region
        %s264 = ssub.s32 %s17, 1
        // Predicated region
        $region49: #{_forward_batched.1} parent=47 // pred_check
          %p265 = pneg %p153
        $region50: #{_forward_batched.1} parent=47 // pred_check_branch
          %267 = sbr.rel (%p265) target = $region52
        $region51: #{_forward_batched.1} parent=47 // pred_region
          %268 = dma.done [#allocation3], 11200
        $region52: #{_forward_batched.1} parent=47 // pred_fallthru
          _
        %p269 = scmp.lt.s32.totalorder %s22, 1
        %s270 = scalar_select %p269, %s22, 1
        %s271 = smul.addr %s270, 8
        %s272 = scalar_lea.vmem %s0, %s271
        %p273 = pneg %p43
        %p274 = pneg %p40
        %p275 = scmp.lt.s32.totalorder %s22, 1
        %s276 = scalar_select %p275, %s22, 1
        %s277 = smul.addr %s276, 8
        %s278 = scalar_lea.vmem %s1, %s277
        %p279 = pneg %p69
        %p280 = pneg %p66
        %p281 = pneg %p90
        %p282 = pneg %p87
        %p283 = pneg %p111
        %p284 = pneg %p108
        %p285 = pneg %p132
        %p286 = pneg %p129
        %p287 = pneg %p153
        %p288 = pneg %p150
        %p289 = pneg %p174
        %p290 = pneg %p171
        %p291 = pneg %p200
        %p292 = pneg %p197
        %s293 = sand.u32 %s187, 1
        %s294 = scalar_lea.sflag [#allocation4], %s293
        %s295 = sand.u32 %s187, 1
        %s296 = smul.addr %s295, 56
        %s297 = scalar_lea.vmem [#allocation5], %s296
        %p298 = scmp.lt.s32.totalorder %s22, 1
        %s299 = scalar_select %p298, %s22, 1
        %s300 = smul.addr %s299, 8
        %s301 = scalar_lea.vmem %s0, %s300
        %p302 = scmp.lt.s32.totalorder %s22, 1
        %s303 = scalar_select %p302, %s22, 1
        %s304 = smul.addr %s303, 8
        %s305 = scalar_lea.vmem %s1, %s304
        %v307 = vld [vmem:[%s4] sm:$0xff]
        %v308 = vld [vmem:[%s4 + $0x8] sm:$0xff]
        %v309 = vld [vmem:[%s301] sm:$0xff]
        %v310 = vpack.c.bf16 %v309, %v309
        %v311 = vld [vmem:[%s2] sm:$0xff]
        %v312 = vld [vmem:[%s2 + $0x8] sm:$0xff]
        %v313 = vld [vmem:[%s2 + $0x10] sm:$0xff]
        %v314 = vld [vmem:[%s2 + $0x18] sm:$0xff]
        %v315 = vld [vmem:[%s2 + $0x20] sm:$0xff]
        %v316 = vld [vmem:[%s2 + $0x28] sm:$0xff]
        %v317 = vld [vmem:[%s2 + $0x30] sm:$0xff]
        %v318 = vld [vmem:[%s2 + $0x38] sm:$0xff]
        %v319 = vld [vmem:[%s2 + $0x40] sm:$0xff]
        %v320 = vld [vmem:[%s2 + $0x48] sm:$0xff]
        %v321 = vld [vmem:[%s2 + $0x50] sm:$0xff]
        %v322 = vld [vmem:[%s2 + $0x58] sm:$0xff]
        %v323 = vld [vmem:[%s2 + $0x60] sm:$0x33]
        %v324 = vld [vmem:[%s305] sm:$0xff]
        %v325 = vpack.c.bf16 %v324, %v324
        %v326 = vld [vmem:[%s3] sm:$0xff]
        %v327 = vld [vmem:[%s3 + $0x8] sm:$0x11]
        %v330 = vunpack.c.l.b16 %v326
        %v331 = vunpack.c.h.b16 %v326
        %v332 = vunpack.c.l.b16 %v327
        %v333 = vunpack.c.h.b16 %v327
        %v334 = vpack.c.b16 %v332, %v330
        %v335 = vpack.c.b16 %v333, %v331
        %vm336 = vcmask 80896
        %v338 = vsel %vm336, %v325, 0
        %vm340 = vcmask 1044480
        %v342 = vsel %vm340, %v334, 0
        %v345 = vsel %vm340, %v335, 0
        %347 = vmatprep.subr.bf16.mxu0 %v345
        %348 = vmatpush1.bf16.msra.mxu0 %v342
        %349 = vmatprep.subr.bf16.mxu0 0
        %350 = vmatpush1.bf16.msra.mxu0 0
        %351 = vmatprep.subr.bf16.mxu0 0
        %352 = vmatpush1.bf16.msra.mxu0 0
        %353 = vmatprep.subr.bf16.mxu0 0
        %354 = vmatpush1.bf16.msra.mxu0 0
        %355 = vmatprep.subr.bf16.mxu0 0
        %356 = vmatpush1.bf16.msra.mxu0 0
        %357 = vmatprep.subr.bf16.mxu0 0
        %358 = vmatpush1.bf16.msra.mxu0 0
        %359 = vmatprep.subr.bf16.mxu0 0
        %360 = vmatpush1.bf16.msra.mxu0 0
        %361 = vmatprep.subr.bf16.mxu0 0
        %362 = vmatpush1.bf16.msra.mxu0 0
        %363 = vmatprep.subr.bf16.mxu0 0
        %364 = vmatpush1.bf16.msra.mxu0 0
        %365 = vmatprep.subr.bf16.mxu0 0
        %366 = vmatpush1.bf16.msra.mxu0 0
        %367 = vmatprep.subr.bf16.mxu0 0
        %368 = vmatpush1.bf16.msra.mxu0 0
        %369 = vmatprep.subr.bf16.mxu0 0
        %370 = vmatpush1.bf16.msra.mxu0 0
        %371 = vmatprep.subr.bf16.mxu0 0
        %372 = vmatpush1.bf16.msra.mxu0 0
        %373 = vmatprep.subr.bf16.mxu0 0
        %374 = vmatpush1.bf16.msra.mxu0 0
        %375 = vmatprep.subr.bf16.mxu0 0
        %376 = vmatpush1.bf16.msra.mxu0 0
        %377 = vmatprep.subr.bf16.mxu0 0
        %378 = vmatpush1.bf16.msra.mxu0 0
        %379 = vmatprep.mubr.bf16.mxu0 0
        %380 = vmatmul.mubr.bf16.gmra.mrb[0].mxu0 %v338
        %v381 = vpop.f32.mrb[0].mxu0
        %v382 = vadd.f32 0.0, %v381
        %v383 = vpop.f32.mrb[0].mxu0
        %v384 = vadd.f32 0.0, %v383
        %v385 = vpop.f32.mrb[0].mxu0
        %v386 = vpop.f32.mrb[0].mxu0
        %387 = vdwg.mxu0
        %v401 = vunpack.c.l.b16 %v311
        %v402 = vunpack.c.h.b16 %v311
        %v403 = vunpack.c.l.b16 %v312
        %v404 = vunpack.c.h.b16 %v312
        %v405 = vunpack.c.l.b16 %v313
        %v406 = vunpack.c.h.b16 %v313
        %v407 = vunpack.c.l.b16 %v314
        %v408 = vunpack.c.h.b16 %v314
        %v409 = vunpack.c.l.b16 %v315
        %v410 = vunpack.c.h.b16 %v315
        %v411 = vunpack.c.l.b16 %v316
        %v412 = vunpack.c.h.b16 %v316
        %v413 = vunpack.c.l.b16 %v317
        %v414 = vunpack.c.h.b16 %v317
        %v415 = vunpack.c.l.b16 %v318
        %v416 = vunpack.c.h.b16 %v318
        %v417 = vunpack.c.l.b16 %v319
        %v418 = vunpack.c.h.b16 %v319
        %v419 = vunpack.c.l.b16 %v320
        %v420 = vunpack.c.h.b16 %v320
        %v421 = vunpack.c.l.b16 %v321
        %v422 = vunpack.c.h.b16 %v321
        %v423 = vunpack.c.l.b16 %v322
        %v424 = vunpack.c.h.b16 %v322
        %v425 = vunpack.c.l.b16 %v323
        %v426 = vunpack.c.h.b16 %v323
        %v427 = vpack.c.b16 %v403, %v401
        %v428 = vpack.c.b16 %v404, %v402
        %v429 = vpack.c.b16 %v407, %v405
        %v430 = vpack.c.b16 %v408, %v406
        %v431 = vpack.c.b16 %v411, %v409
        %v432 = vpack.c.b16 %v412, %v410
        %v433 = vpack.c.b16 %v415, %v413
        %v434 = vpack.c.b16 %v416, %v414
        %v435 = vpack.c.b16 %v419, %v417
        %v436 = vpack.c.b16 %v420, %v418
        %v437 = vpack.c.b16 %v423, %v421
        %v438 = vpack.c.b16 %v424, %v422
        %v439 = vpack.c.b16 %v425, %v425
        %v440 = vpack.c.b16 %v426, %v426
        %vm453 = vcmask 818176
        %v455 = vsel %vm453, %v310, 0
        %vm457 = vcmask 1041408
        %v459 = vsel %vm457, %v439, 0
        %v462 = vsel %vm457, %v440, 0
        %464 = vmatprep.subr.bf16.mxu0 %v428
        %465 = vmatpush1.bf16.msra.mxu0 %v427
        %466 = vmatprep.subr.bf16.mxu0 %v430
        %467 = vmatpush1.bf16.msra.mxu0 %v429
        %468 = vmatprep.subr.bf16.mxu0 %v432
        %469 = vmatpush1.bf16.msra.mxu0 %v431
        %470 = vmatprep.subr.bf16.mxu0 %v434
        %471 = vmatpush1.bf16.msra.mxu0 %v433
        %472 = vmatprep.subr.bf16.mxu0 %v436
        %473 = vmatpush1.bf16.msra.mxu0 %v435
        %474 = vmatprep.subr.bf16.mxu0 %v438
        %475 = vmatpush1.bf16.msra.mxu0 %v437
        %476 = vmatprep.subr.bf16.mxu0 %v462
        %477 = vmatpush1.bf16.msra.mxu0 %v459
        %478 = vmatprep.subr.bf16.mxu0 0
        %479 = vmatpush1.bf16.msra.mxu0 0
        %480 = vmatprep.subr.bf16.mxu0 0
        %481 = vmatpush1.bf16.msra.mxu0 0
        %482 = vmatprep.subr.bf16.mxu0 0
        %483 = vmatpush1.bf16.msra.mxu0 0
        %484 = vmatprep.subr.bf16.mxu0 0
        %485 = vmatpush1.bf16.msra.mxu0 0
        %486 = vmatprep.subr.bf16.mxu0 0
        %487 = vmatpush1.bf16.msra.mxu0 0
        %488 = vmatprep.subr.bf16.mxu0 0
        %489 = vmatpush1.bf16.msra.mxu0 0
        %490 = vmatprep.subr.bf16.mxu0 0
        %491 = vmatpush1.bf16.msra.mxu0 0
        %492 = vmatprep.subr.bf16.mxu0 0
        %493 = vmatpush1.bf16.msra.mxu0 0
        %494 = vmatprep.subr.bf16.mxu0 0
        %495 = vmatpush1.bf16.msra.mxu0 0
        %496 = vmatprep.mubr.bf16.mxu0 0
        %497 = vmatmul.mubr.bf16.gmra.mrb[0].mxu0 %v455
        %v498 = vpop.f32.mrb[0].mxu0
        %v499 = vadd.f32 %v382, %v498
        %v500 = vpop.f32.mrb[0].mxu0
        %v501 = vadd.f32 %v384, %v500
        %v502 = vpop.f32.mrb[0].mxu0
        %v503 = vpop.f32.mrb[0].mxu0
        %504 = vdwg.mxu0
        %v505 = vlaneseq
        %v506 = vshrl.u32 %v505, 7
        %v507 = vsub.s32 0, %v506
        %v508 = vrot.slane %v307, %v507
        %v509 = vlaneseq
        %v510 = vshrl.u32 %v509, 7
        %v511 = vsub.s32 0, %v510
        %v512 = vrot.slane %v308, %v511
        %v513 = vadd.f32 %v499, %v508
        %v514 = vadd.f32 %v501, %v512
        %v515 = vmul.f32 %v513, 0.02
        %v516 = vmul.f32 %v514, 0.02
        %v517 = vmax.f32 %v513, %v515
        %v518 = vmax.f32 %v514, %v516
        %vm519 = vcmask 588800
        %v520 = vsel %vm519, %v518, 0.0
        %v521 = vadd.f32 %v517, %v520
        %522 = vadd.xlane.f32.xlu0 %v521
        %v523 = vpop.xlane.xlu0 %522
        %v524 = vmul.f32 %v517, %v517
        %v525 = vmul.f32 %v518, %v518
        %v526 = vsel %vm519, %v525, 0.0
        %v527 = vadd.f32 %v524, %v526
        %528 = vadd.xlane.f32.xlu0 %v527
        %v529 = vpop.xlane.xlu0 %528
        %v530 = vmul.f32 %v523, 0.005
        %v531 = vmul.f32 %v529, 0.005
        %v532 = vmul.f32 %v530, %v530
        %v533 = vsub.f32 %v531, %v532
        %v534 = vsub.f32 %v517, %v530
        %v535 = vsub.f32 %v518, %v530
        %v536 = vadd.f32 %v533, 1e-05
        %v537 = vrsqrt.pop %v536
        %v538 = vmul.f32 %v534, %v537
        %v539 = vmul.f32 %v535, %v537
        %v540 = vlaneseq
        %v541 = vshrl.u32 %v540, 7
        %v542 = vsub.s32 1, %v541
        %v543 = vrot.slane %v307, %v542
        %v544 = vlaneseq
        %v545 = vshrl.u32 %v544, 7
        %v546 = vsub.s32 1, %v545
        %v547 = vrot.slane %v308, %v546
        %v548 = vmul.f32 %v538, %v543
        %v549 = vmul.f32 %v539, %v547
        %v550 = vlaneseq
        %v551 = vshrl.u32 %v550, 7
        %v552 = vsub.s32 2, %v551
        %v553 = vrot.slane %v307, %v552
        %v554 = vlaneseq
        %v555 = vshrl.u32 %v554, 7
        %v556 = vsub.s32 2, %v555
        %v557 = vrot.slane %v308, %v556
        %v558 = vadd.f32 %v548, %v553
        %v559 = vadd.f32 %v549, %v557
        %v560 = vpack.c.bf16 %v558, %v558
        %v561 = vpack.c.bf16 %v559, %v559
        %v562 = vld [vmem:[#allocation2] sm:$0xff]
        %v563 = vld [vmem:[#allocation2 + $0x8] sm:$0xff]
        %v564 = vld [vmem:[#allocation2 + $0x10] sm:$0xff]
        %v565 = vld [vmem:[#allocation2 + $0x18] sm:$0xf]
        %v566 = vld [vmem:[#allocation2 + $0x1c] sm:$0xff]
        %v567 = vld [vmem:[#allocation2 + $0x24] sm:$0xff]
        %v568 = vld [vmem:[#allocation2 + $0x2c] sm:$0xff]
        %v569 = vld [vmem:[#allocation2 + $0x34] sm:$0xf]
        %v570 = vld [vmem:[#allocation2 + $0x38] sm:$0xff]
        %v571 = vld [vmem:[#allocation2 + $0x40] sm:$0xff]
        %v572 = vld [vmem:[#allocation2 + $0x48] sm:$0xff]
        %v573 = vld [vmem:[#allocation2 + $0x50] sm:$0xf]
        %v574 = vld [vmem:[#allocation2 + $0x54] sm:$0xff]
        %v575 = vld [vmem:[#allocation2 + $0x5c] sm:$0xff]
        %v576 = vld [vmem:[#allocation2 + $0x64] sm:$0xff]
        %v577 = vld [vmem:[#allocation2 + $0x6c] sm:$0xf]
        %v578 = vld [vmem:[#allocation2 + $0x70] sm:$0xff]
        %v579 = vld [vmem:[#allocation2 + $0x78] sm:$0xff]
        %v580 = vld [vmem:[#allocation2 + $0x80] sm:$0xff]
        %v581 = vld [vmem:[#allocation2 + $0x88] sm:$0xf]
        %v582 = vld [vmem:[#allocation2 + $0x8c] sm:$0xff]
        %v583 = vld [vmem:[#allocation2 + $0x94] sm:$0xff]
        %v584 = vld [vmem:[#allocation2 + $0x9c] sm:$0xff]
        %v585 = vld [vmem:[#allocation2 + $0xa4] sm:$0xf]
        %v586 = vld [vmem:[#allocation2 + $0xa8] sm:$0xff]
        %v587 = vld [vmem:[#allocation2 + $0xb0] sm:$0xff]
        %v588 = vld [vmem:[#allocation2 + $0xb8] sm:$0xff]
        %v589 = vld [vmem:[#allocation2 + $0xc0] sm:$0xf]
        %v590 = vld [vmem:[#allocation2 + $0xc4] sm:$0xff]
        %v591 = vld [vmem:[#allocation2 + $0xcc] sm:$0xff]
        %v592 = vld [vmem:[#allocation2 + $0xd4] sm:$0xff]
        %v593 = vld [vmem:[#allocation2 + $0xdc] sm:$0xf]
        %v594 = vld [vmem:[#allocation2 + $0xe0] sm:$0xff]
        %v595 = vld [vmem:[#allocation2 + $0xe8] sm:$0xff]
        %v596 = vld [vmem:[#allocation2 + $0xf0] sm:$0xff]
        %v597 = vld [vmem:[#allocation2 + $0xf8] sm:$0xf]
        %v598 = vld [vmem:[#allocation2 + $0xfc] sm:$0xff]
        %v599 = vld [vmem:[#allocation2 + $0x104] sm:$0xff]
        %v600 = vld [vmem:[#allocation2 + $0x10c] sm:$0xff]
        %v601 = vld [vmem:[#allocation2 + $0x114] sm:$0xf]
        %v602 = vld [vmem:[#allocation2 + $0x118] sm:$0xff]
        %v603 = vld [vmem:[#allocation2 + $0x120] sm:$0xff]
        %v604 = vld [vmem:[#allocation2 + $0x128] sm:$0xff]
        %v605 = vld [vmem:[#allocation2 + $0x130] sm:$0xf]
        %v606 = vld [vmem:[#allocation2 + $0x134] sm:$0xff]
        %v607 = vld [vmem:[#allocation2 + $0x13c] sm:$0xff]
        %v608 = vld [vmem:[#allocation2 + $0x144] sm:$0xff]
        %v609 = vld [vmem:[#allocation2 + $0x14c] sm:$0xf]
        %v610 = vld [vmem:[#allocation2 + $0x150] sm:$0xff]
        %v611 = vld [vmem:[#allocation2 + $0x158] sm:$0xff]
        %v612 = vld [vmem:[#allocation2 + $0x160] sm:$0xff]
        %v613 = vld [vmem:[#allocation2 + $0x168] sm:$0xf]
        %v614 = vld [vmem:[#allocation2 + $0x16c] sm:$0xff]
        %v615 = vld [vmem:[#allocation2 + $0x174] sm:$0xff]
        %v616 = vld [vmem:[#allocation2 + $0x17c] sm:$0xff]
        %v617 = vld [vmem:[#allocation2 + $0x184] sm:$0xf]
        %v618 = vld [vmem:[#allocation2 + $0x188] sm:$0xff]
        %v619 = vld [vmem:[#allocation2 + $0x190] sm:$0xff]
        %v620 = vld [vmem:[#allocation2 + $0x198] sm:$0xff]
        %v621 = vld [vmem:[#allocation2 + $0x1a0] sm:$0xf]
        %v622 = vld [vmem:[#allocation2 + $0x1a4] sm:$0xff]
        %v623 = vld [vmem:[#allocation2 + $0x1ac] sm:$0xff]
        %v624 = vld [vmem:[#allocation2 + $0x1b4] sm:$0xff]
        %v625 = vld [vmem:[#allocation2 + $0x1bc] sm:$0xf]
        %v626 = vld [vmem:[#allocation2 + $0x1c0] sm:$0xff]
        %v627 = vld [vmem:[#allocation2 + $0x1c8] sm:$0xff]
        %v628 = vld [vmem:[#allocation2 + $0x1d0] sm:$0xff]
        %v629 = vld [vmem:[#allocation2 + $0x1d8] sm:$0xf]
        %v630 = vld [vmem:[#allocation2 + $0x1dc] sm:$0xff]
        %v631 = vld [vmem:[#allocation2 + $0x1e4] sm:$0xff]
        %v632 = vld [vmem:[#allocation2 + $0x1ec] sm:$0xff]
        %v633 = vld [vmem:[#allocation2 + $0x1f4] sm:$0xf]
        %v634 = vld [vmem:[#allocation2 + $0x1f8] sm:$0xff]
        %v635 = vld [vmem:[#allocation2 + $0x200] sm:$0xff]
        %v636 = vld [vmem:[#allocation2 + $0x208] sm:$0xff]
        %v637 = vld [vmem:[#allocation2 + $0x210] sm:$0xf]
        %v638 = vld [vmem:[#allocation2 + $0x214] sm:$0xff]
        %v639 = vld [vmem:[#allocation2 + $0x21c] sm:$0xff]
        %v640 = vld [vmem:[#allocation2 + $0x224] sm:$0xff]
        %v641 = vld [vmem:[#allocation2 + $0x22c] sm:$0xf]
        %v642 = vld [vmem:[#allocation2 + $0x230] sm:$0xff]
        %v643 = vld [vmem:[#allocation2 + $0x238] sm:$0xff]
        %v644 = vld [vmem:[#allocation2 + $0x240] sm:$0xff]
        %v645 = vld [vmem:[#allocation2 + $0x248] sm:$0xf]
        %v646 = vld [vmem:[#allocation2 + $0x24c] sm:$0xff]
        %v647 = vld [vmem:[#allocation2 + $0x254] sm:$0xff]
        %v648 = vld [vmem:[#allocation2 + $0x25c] sm:$0xff]
        %v649 = vld [vmem:[#allocation2 + $0x264] sm:$0xf]
        %v650 = vld [vmem:[#allocation2 + $0x268] sm:$0xff]
        %v651 = vld [vmem:[#allocation2 + $0x270] sm:$0xff]
        %v652 = vld [vmem:[#allocation2 + $0x278] sm:$0xff]
        %v653 = vld [vmem:[#allocation2 + $0x280] sm:$0xf]
        %v654 = vld [vmem:[#allocation2 + $0x284] sm:$0xff]
        %v655 = vld [vmem:[#allocation2 + $0x28c] sm:$0xff]
        %v656 = vld [vmem:[#allocation2 + $0x294] sm:$0xff]
        %v657 = vld [vmem:[#allocation2 + $0x29c] sm:$0xf]
        %v658 = vld [vmem:[#allocation2 + $0x2a0] sm:$0xff]
        %v659 = vld [vmem:[#allocation2 + $0x2a8] sm:$0xff]
        %v660 = vld [vmem:[#allocation2 + $0x2b0] sm:$0xff]
        %v661 = vld [vmem:[#allocation2 + $0x2b8] sm:$0xf]
        %v662 = vld [vmem:[%s6] sm:$0x7f]
        %v664 = vlaneseq
        %v665 = vshrl.u32 %v664, 7
        %v666 = vsub.s32 0, %v665
        %v667 = vrot.slane %v662, %v666
        %v668 = vlaneseq
        %v669 = vshrl.u32 %v668, 7
        %v670 = vsub.s32 1, %v669
        %v671 = vrot.slane %v662, %v670
        %v672 = vlaneseq
        %v673 = vshrl.u32 %v672, 7
        %v674 = vsub.s32 2, %v673
        %v675 = vrot.slane %v662, %v674
        %v676 = vlaneseq
        %v677 = vshrl.u32 %v676, 7
        %v678 = vsub.s32 3, %v677
        %v679 = vrot.slane %v662, %v678
        %v680 = vlaneseq
        %v681 = vshrl.u32 %v680, 7
        %v682 = vsub.s32 4, %v681
        %v683 = vrot.slane %v662, %v682
        %v684 = vlaneseq
        %v685 = vshrl.u32 %v684, 7
        %v686 = vsub.s32 5, %v685
        %v687 = vrot.slane %v662, %v686
        %v688 = vlaneseq
        %v689 = vshrl.u32 %v688, 7
        %v690 = vsub.s32 6, %v689
        %v691 = vrot.slane %v662, %v690
        %v799 = vunpack.c.l.b16 %v562
        %v800 = vunpack.c.h.b16 %v562
        %v801 = vunpack.c.l.b16 %v563
        %v802 = vunpack.c.h.b16 %v563
        %v803 = vunpack.c.l.b16 %v564
        %v804 = vunpack.c.h.b16 %v564
        %v805 = vunpack.c.l.b16 %v565
        %v806 = vunpack.c.l.b16 %v566
        %v807 = vunpack.c.h.b16 %v566
        %v808 = vunpack.c.l.b16 %v567
        %v809 = vunpack.c.h.b16 %v567
        %v810 = vunpack.c.l.b16 %v568
        %v811 = vunpack.c.h.b16 %v568
        %v812 = vunpack.c.l.b16 %v569
        %v813 = vunpack.c.l.b16 %v570
        %v814 = vunpack.c.h.b16 %v570
        %v815 = vunpack.c.l.b16 %v571
        %v816 = vunpack.c.h.b16 %v571
        %v817 = vunpack.c.l.b16 %v572
        %v818 = vunpack.c.h.b16 %v572
        %v819 = vunpack.c.l.b16 %v573
        %v820 = vunpack.c.l.b16 %v574
        %v821 = vunpack.c.h.b16 %v574
        %v822 = vunpack.c.l.b16 %v575
        %v823 = vunpack.c.h.b16 %v575
        %v824 = vunpack.c.l.b16 %v576
        %v825 = vunpack.c.h.b16 %v576
        %v826 = vunpack.c.l.b16 %v577
        %v827 = vunpack.c.l.b16 %v578
        %v828 = vunpack.c.h.b16 %v578
        %v829 = vunpack.c.l.b16 %v579
        %v830 = vunpack.c.h.b16 %v579
        %v831 = vunpack.c.l.b16 %v580
        %v832 = vunpack.c.h.b16 %v580
        %v833 = vunpack.c.l.b16 %v581
        %v834 = vunpack.c.l.b16 %v582
        %v835 = vunpack.c.h.b16 %v582
        %v836 = vunpack.c.l.b16 %v583
        %v837 = vunpack.c.h.b16 %v583
        %v838 = vunpack.c.l.b16 %v584
        %v839 = vunpack.c.h.b16 %v584
        %v840 = vunpack.c.l.b16 %v585
        %v841 = vunpack.c.l.b16 %v586
        %v842 = vunpack.c.h.b16 %v586
        %v843 = vunpack.c.l.b16 %v587
        %v844 = vunpack.c.h.b16 %v587
        %v845 = vunpack.c.l.b16 %v588
        %v846 = vunpack.c.h.b16 %v588
        %v847 = vunpack.c.l.b16 %v589
        %v848 = vunpack.c.l.b16 %v590
        %v849 = vunpack.c.h.b16 %v590
        %v850 = vunpack.c.l.b16 %v591
        %v851 = vunpack.c.h.b16 %v591
        %v852 = vunpack.c.l.b16 %v592
        %v853 = vunpack.c.h.b16 %v592
        %v854 = vunpack.c.l.b16 %v593
        %v855 = vunpack.c.l.b16 %v594
        %v856 = vunpack.c.h.b16 %v594
        %v857 = vunpack.c.l.b16 %v595
        %v858 = vunpack.c.h.b16 %v595
        %v859 = vunpack.c.l.b16 %v596
        %v860 = vunpack.c.h.b16 %v596
        %v861 = vunpack.c.l.b16 %v597
        %v862 = vunpack.c.l.b16 %v598
        %v863 = vunpack.c.h.b16 %v598
        %v864 = vunpack.c.l.b16 %v599
        %v865 = vunpack.c.h.b16 %v599
        %v866 = vunpack.c.l.b16 %v600
        %v867 = vunpack.c.h.b16 %v600
        %v868 = vunpack.c.l.b16 %v601
        %v869 = vunpack.c.l.b16 %v602
        %v870 = vunpack.c.h.b16 %v602
        %v871 = vunpack.c.l.b16 %v603
        %v872 = vunpack.c.h.b16 %v603
        %v873 = vunpack.c.l.b16 %v604
        %v874 = vunpack.c.h.b16 %v604
        %v875 = vunpack.c.l.b16 %v605
        %v876 = vunpack.c.l.b16 %v606
        %v877 = vunpack.c.h.b16 %v606
        %v878 = vunpack.c.l.b16 %v607
        %v879 = vunpack.c.h.b16 %v607
        %v880 = vunpack.c.l.b16 %v608
        %v881 = vunpack.c.h.b16 %v608
        %v882 = vunpack.c.l.b16 %v609
        %v883 = vunpack.c.l.b16 %v610
        %v884 = vunpack.c.h.b16 %v610
        %v885 = vunpack.c.l.b16 %v611
        %v886 = vunpack.c.h.b16 %v611
        %v887 = vunpack.c.l.b16 %v612
        %v888 = vunpack.c.h.b16 %v612
        %v889 = vunpack.c.l.b16 %v613
        %v890 = vunpack.c.l.b16 %v614
        %v891 = vunpack.c.h.b16 %v614
        %v892 = vunpack.c.l.b16 %v615
        %v893 = vunpack.c.h.b16 %v615
        %v894 = vunpack.c.l.b16 %v616
        %v895 = vunpack.c.h.b16 %v616
        %v896 = vunpack.c.l.b16 %v617
        %v897 = vunpack.c.l.b16 %v618
        %v898 = vunpack.c.h.b16 %v618
        %v899 = vunpack.c.l.b16 %v619
        %v900 = vunpack.c.h.b16 %v619
        %v901 = vunpack.c.l.b16 %v620
        %v902 = vunpack.c.h.b16 %v620
        %v903 = vunpack.c.l.b16 %v621
        %v904 = vunpack.c.l.b16 %v622
        %v905 = vunpack.c.h.b16 %v622
        %v906 = vunpack.c.l.b16 %v623
        %v907 = vunpack.c.h.b16 %v623
        %v908 = vunpack.c.l.b16 %v624
        %v909 = vunpack.c.h.b16 %v624
        %v910 = vunpack.c.l.b16 %v625
        %v911 = vunpack.c.l.b16 %v626
        %v912 = vunpack.c.h.b16 %v626
        %v913 = vunpack.c.l.b16 %v627
        %v914 = vunpack.c.h.b16 %v627
        %v915 = vunpack.c.l.b16 %v628
        %v916 = vunpack.c.h.b16 %v628
        %v917 = vunpack.c.l.b16 %v629
        %v918 = vunpack.c.l.b16 %v630
        %v919 = vunpack.c.h.b16 %v630
        %v920 = vunpack.c.l.b16 %v631
        %v921 = vunpack.c.h.b16 %v631
        %v922 = vunpack.c.l.b16 %v632
        %v923 = vunpack.c.h.b16 %v632
        %v924 = vunpack.c.l.b16 %v633
        %v925 = vunpack.c.l.b16 %v634
        %v926 = vunpack.c.h.b16 %v634
        %v927 = vunpack.c.l.b16 %v635
        %v928 = vunpack.c.h.b16 %v635
        %v929 = vunpack.c.l.b16 %v636
        %v930 = vunpack.c.h.b16 %v636
        %v931 = vunpack.c.l.b16 %v637
        %v932 = vunpack.c.l.b16 %v638
        %v933 = vunpack.c.h.b16 %v638
        %v934 = vunpack.c.l.b16 %v639
        %v935 = vunpack.c.h.b16 %v639
        %v936 = vunpack.c.l.b16 %v640
        %v937 = vunpack.c.h.b16 %v640
        %v938 = vunpack.c.l.b16 %v641
        %v939 = vunpack.c.l.b16 %v642
        %v940 = vunpack.c.h.b16 %v642
        %v941 = vunpack.c.l.b16 %v643
        %v942 = vunpack.c.h.b16 %v643
        %v943 = vunpack.c.l.b16 %v644
        %v944 = vunpack.c.h.b16 %v644
        %v945 = vunpack.c.l.b16 %v645
        %v946 = vunpack.c.l.b16 %v646
        %v947 = vunpack.c.h.b16 %v646
        %v948 = vunpack.c.l.b16 %v647
        %v949 = vunpack.c.h.b16 %v647
        %v950 = vunpack.c.l.b16 %v648
        %v951 = vunpack.c.h.b16 %v648
        %v952 = vunpack.c.l.b16 %v649
        %v953 = vunpack.c.l.b16 %v650
        %v954 = vunpack.c.h.b16 %v650
        %v955 = vunpack.c.l.b16 %v651
        %v956 = vunpack.c.h.b16 %v651
        %v957 = vunpack.c.l.b16 %v652
        %v958 = vunpack.c.h.b16 %v652
        %v959 = vunpack.c.l.b16 %v653
        %v960 = vunpack.c.l.b16 %v654
        %v961 = vunpack.c.h.b16 %v654
        %v962 = vunpack.c.l.b16 %v655
        %v963 = vunpack.c.h.b16 %v655
        %v964 = vunpack.c.l.b16 %v656
        %v965 = vunpack.c.h.b16 %v656
        %v966 = vunpack.c.l.b16 %v657
        %v967 = vunpack.c.l.b16 %v658
        %v968 = vunpack.c.h.b16 %v658
        %v969 = vunpack.c.l.b16 %v659
        %v970 = vunpack.c.h.b16 %v659
        %v971 = vunpack.c.l.b16 %v660
        %v972 = vunpack.c.h.b16 %v660
        %v973 = vunpack.c.l.b16 %v661
        %v974 = vpack.c.b16 %v806, %v799
        %v975 = vpack.c.b16 %v807, %v800
        %v976 = vpack.c.b16 %v808, %v801
        %v977 = vpack.c.b16 %v809, %v802
        %v978 = vpack.c.b16 %v810, %v803
        %v979 = vpack.c.b16 %v811, %v804
        %v980 = vpack.c.b16 %v812, %v805
        %v981 = vpack.c.b16 %v820, %v813
        %v982 = vpack.c.b16 %v821, %v814
        %v983 = vpack.c.b16 %v822, %v815
        %v984 = vpack.c.b16 %v823, %v816
        %v985 = vpack.c.b16 %v824, %v817
        %v986 = vpack.c.b16 %v825, %v818
        %v987 = vpack.c.b16 %v826, %v819
        %v988 = vpack.c.b16 %v834, %v827
        %v989 = vpack.c.b16 %v835, %v828
        %v990 = vpack.c.b16 %v836, %v829
        %v991 = vpack.c.b16 %v837, %v830
        %v992 = vpack.c.b16 %v838, %v831
        %v993 = vpack.c.b16 %v839, %v832
        %v994 = vpack.c.b16 %v840, %v833
        %v995 = vpack.c.b16 %v848, %v841
        %v996 = vpack.c.b16 %v849, %v842
        %v997 = vpack.c.b16 %v850, %v843
        %v998 = vpack.c.b16 %v851, %v844
        %v999 = vpack.c.b16 %v852, %v845
        %v1000 = vpack.c.b16 %v853, %v846
        %v1001 = vpack.c.b16 %v854, %v847
        %v1002 = vpack.c.b16 %v862, %v855
        %v1003 = vpack.c.b16 %v863, %v856
        %v1004 = vpack.c.b16 %v864, %v857
        %v1005 = vpack.c.b16 %v865, %v858
        %v1006 = vpack.c.b16 %v866, %v859
        %v1007 = vpack.c.b16 %v867, %v860
        %v1008 = vpack.c.b16 %v868, %v861
        %v1009 = vpack.c.b16 %v876, %v869
        %v1010 = vpack.c.b16 %v877, %v870
        %v1011 = vpack.c.b16 %v878, %v871
        %v1012 = vpack.c.b16 %v879, %v872
        %v1013 = vpack.c.b16 %v880, %v873
        %v1014 = vpack.c.b16 %v881, %v874
        %v1015 = vpack.c.b16 %v882, %v875
        %v1016 = vpack.c.b16 %v890, %v883
        %v1017 = vpack.c.b16 %v891, %v884
        %v1018 = vpack.c.b16 %v892, %v885
        %v1019 = vpack.c.b16 %v893, %v886
        %v1020 = vpack.c.b16 %v894, %v887
        %v1021 = vpack.c.b16 %v895, %v888
        %v1022 = vpack.c.b16 %v896, %v889
        %v1023 = vpack.c.b16 %v904, %v897
        %v1024 = vpack.c.b16 %v905, %v898
        %v1025 = vpack.c.b16 %v906, %v899
        %v1026 = vpack.c.b16 %v907, %v900
        %v1027 = vpack.c.b16 %v908, %v901
        %v1028 = vpack.c.b16 %v909, %v902
        %v1029 = vpack.c.b16 %v910, %v903
        %v1030 = vpack.c.b16 %v918, %v911
        %v1031 = vpack.c.b16 %v919, %v912
        %v1032 = vpack.c.b16 %v920, %v913
        %v1033 = vpack.c.b16 %v921, %v914
        %v1034 = vpack.c.b16 %v922, %v915
        %v1035 = vpack.c.b16 %v923, %v916
        %v1036 = vpack.c.b16 %v924, %v917
        %v1037 = vpack.c.b16 %v932, %v925
        %v1038 = vpack.c.b16 %v933, %v926
        %v1039 = vpack.c.b16 %v934, %v927
        %v1040 = vpack.c.b16 %v935, %v928
        %v1041 = vpack.c.b16 %v936, %v929
        %v1042 = vpack.c.b16 %v937, %v930
        %v1043 = vpack.c.b16 %v938, %v931
        %v1044 = vpack.c.b16 %v946, %v939
        %v1045 = vpack.c.b16 %v947, %v940
        %v1046 = vpack.c.b16 %v948, %v941
        %v1047 = vpack.c.b16 %v949, %v942
        %v1048 = vpack.c.b16 %v950, %v943
        %v1049 = vpack.c.b16 %v951, %v944
        %v1050 = vpack.c.b16 %v952, %v945
        %v1051 = vpack.c.b16 %v960, %v953
        %v1052 = vpack.c.b16 %v961, %v954
        %v1053 = vpack.c.b16 %v962, %v955
        %v1054 = vpack.c.b16 %v963, %v956
        %v1055 = vpack.c.b16 %v964, %v957
        %v1056 = vpack.c.b16 %v965, %v958
        %v1057 = vpack.c.b16 %v966, %v959
        %v1058 = vpack.c.b16 %v967, %v967
        %v1059 = vpack.c.b16 %v968, %v968
        %v1060 = vpack.c.b16 %v969, %v969
        %v1061 = vpack.c.b16 %v970, %v970
        %v1062 = vpack.c.b16 %v971, %v971
        %v1063 = vpack.c.b16 %v972, %v972
        %v1064 = vpack.c.b16 %v973, %v973
        %v1150 = vsel %vm519, %v561, 0
        %vm1152 = vcmask 1043456
        %v1154 = vsel %vm1152, %v1058, 0
        %v1157 = vsel %vm1152, %v1059, 0
        %v1160 = vsel %vm1152, %v1060, 0
        %v1163 = vsel %vm1152, %v1061, 0
        %v1166 = vsel %vm1152, %v1062, 0
        %v1169 = vsel %vm1152, %v1063, 0
        %v1172 = vsel %vm1152, %v1064, 0
        %1174 = vmatprep.subr.bf16.mxu0 %v975
        %1175 = vmatpush1.bf16.msra.mxu0 %v974
        %1176 = vmatprep.subr.bf16.mxu0 %v982
        %1177 = vmatpush1.bf16.msra.mxu0 %v981
        %1178 = vmatprep.subr.bf16.mxu0 %v989
        %1179 = vmatpush1.bf16.msra.mxu0 %v988
        %1180 = vmatprep.subr.bf16.mxu0 %v996
        %1181 = vmatpush1.bf16.msra.mxu0 %v995
        %1182 = vmatprep.subr.bf16.mxu0 %v1003
        %1183 = vmatpush1.bf16.msra.mxu0 %v1002
        %1184 = vmatprep.subr.bf16.mxu0 %v1010
        %1185 = vmatpush1.bf16.msra.mxu0 %v1009
        %1186 = vmatprep.subr.bf16.mxu0 %v1017
        %1187 = vmatpush1.bf16.msra.mxu0 %v1016
        %1188 = vmatprep.subr.bf16.mxu0 %v1024
        %1189 = vmatpush1.bf16.msra.mxu0 %v1023
        %1190 = vmatprep.subr.bf16.mxu0 %v1031
        %1191 = vmatpush1.bf16.msra.mxu0 %v1030
        %1192 = vmatprep.subr.bf16.mxu0 %v1038
        %1193 = vmatpush1.bf16.msra.mxu0 %v1037
        %1194 = vmatprep.subr.bf16.mxu0 %v1045
        %1195 = vmatpush1.bf16.msra.mxu0 %v1044
        %1196 = vmatprep.subr.bf16.mxu0 %v1052
        %1197 = vmatpush1.bf16.msra.mxu0 %v1051
        %1198 = vmatprep.subr.bf16.mxu0 %v1157
        %1199 = vmatpush1.bf16.msra.mxu0 %v1154
        %1200 = vmatprep.subr.bf16.mxu0 0
        %1201 = vmatpush1.bf16.msra.mxu0 0
        %1202 = vmatprep.subr.bf16.mxu0 0
        %1203 = vmatpush1.bf16.msra.mxu0 0
        %1204 = vmatprep.subr.bf16.mxu0 0
        %1205 = vmatpush1.bf16.msra.mxu0 0
        %1206 = vmatprep.mubr.bf16.mxu0 %v1150
        %1207 = vmatmul.mubr.bf16.gmra.mrb[0].mxu0 %v560
        %v1208 = vpop.f32.mrb[0].mxu0
        %v1209 = vadd.f32 %v667, %v1208
        %v1210 = vpop.f32.mrb[0].mxu0
        %v1211 = vadd.f32 %v671, %v1210
        %v1212 = vpop.f32.mrb[0].mxu0
        %v1213 = vpop.f32.mrb[0].mxu0
        %1214 = vdwg.mxu0
        %1215 = vmatprep.subr.bf16.mxu0 %v977
        %1216 = vmatpush1.bf16.msra.mxu0 %v976
        %1217 = vmatprep.subr.bf16.mxu0 %v984
        %1218 = vmatpush1.bf16.msra.mxu0 %v983
        %1219 = vmatprep.subr.bf16.mxu0 %v991
        %1220 = vmatpush1.bf16.msra.mxu0 %v990
        %1221 = vmatprep.subr.bf16.mxu0 %v998
        %1222 = vmatpush1.bf16.msra.mxu0 %v997
        %1223 = vmatprep.subr.bf16.mxu0 %v1005
        %1224 = vmatpush1.bf16.msra.mxu0 %v1004
        %1225 = vmatprep.subr.bf16.mxu0 %v1012
        %1226 = vmatpush1.bf16.msra.mxu0 %v1011
        %1227 = vmatprep.subr.bf16.mxu0 %v1019
        %1228 = vmatpush1.bf16.msra.mxu0 %v1018
        %1229 = vmatprep.subr.bf16.mxu0 %v1026
        %1230 = vmatpush1.bf16.msra.mxu0 %v1025
        %1231 = vmatprep.subr.bf16.mxu0 %v1033
        %1232 = vmatpush1.bf16.msra.mxu0 %v1032
        %1233 = vmatprep.subr.bf16.mxu0 %v1040
        %1234 = vmatpush1.bf16.msra.mxu0 %v1039
        %1235 = vmatprep.subr.bf16.mxu0 %v1047
        %1236 = vmatpush1.bf16.msra.mxu0 %v1046
        %1237 = vmatprep.subr.bf16.mxu0 %v1054
        %1238 = vmatpush1.bf16.msra.mxu0 %v1053
        %1239 = vmatprep.subr.bf16.mxu0 %v1163
        %1240 = vmatpush1.bf16.msra.mxu0 %v1160
        %1241 = vmatprep.subr.bf16.mxu0 0
        %1242 = vmatpush1.bf16.msra.mxu0 0
        %1243 = vmatprep.subr.bf16.mxu0 0
        %1244 = vmatpush1.bf16.msra.mxu0 0
        %1245 = vmatprep.subr.bf16.mxu0 0
        %1246 = vmatpush1.bf16.msra.mxu0 0
        %1247 = vmatprep.mubr.bf16.mxu0 %v1150
        %1248 = vmatmul.mubr.bf16.gmra.mrb[0].mxu0 %v560
        %v1249 = vpop.f32.mrb[0].mxu0
        %v1250 = vadd.f32 %v675, %v1249
        %v1251 = vpop.f32.mrb[0].mxu0
        %v1252 = vadd.f32 %v679, %v1251
        %v1253 = vpop.f32.mrb[0].mxu0
        %v1254 = vpop.f32.mrb[0].mxu0
        %1255 = vdwg.mxu0
        %1256 = vmatprep.subr.bf16.mxu0 %v979
        %1257 = vmatpush1.bf16.msra.mxu0 %v978
        %1258 = vmatprep.subr.bf16.mxu0 %v986
        %1259 = vmatpush1.bf16.msra.mxu0 %v985
        %1260 = vmatprep.subr.bf16.mxu0 %v993
        %1261 = vmatpush1.bf16.msra.mxu0 %v992
        %1262 = vmatprep.subr.bf16.mxu0 %v1000
        %1263 = vmatpush1.bf16.msra.mxu0 %v999
        %1264 = vmatprep.subr.bf16.mxu0 %v1007
        %1265 = vmatpush1.bf16.msra.mxu0 %v1006
        %1266 = vmatprep.subr.bf16.mxu0 %v1014
        %1267 = vmatpush1.bf16.msra.mxu0 %v1013
        %1268 = vmatprep.subr.bf16.mxu0 %v1021
        %1269 = vmatpush1.bf16.msra.mxu0 %v1020
        %1270 = vmatprep.subr.bf16.mxu0 %v1028
        %1271 = vmatpush1.bf16.msra.mxu0 %v1027
        %1272 = vmatprep.subr.bf16.mxu0 %v1035
        %1273 = vmatpush1.bf16.msra.mxu0 %v1034
        %1274 = vmatprep.subr.bf16.mxu0 %v1042
        %1275 = vmatpush1.bf16.msra.mxu0 %v1041
        %1276 = vmatprep.subr.bf16.mxu0 %v1049
        %1277 = vmatpush1.bf16.msra.mxu0 %v1048
        %1278 = vmatprep.subr.bf16.mxu0 %v1056
        %1279 = vmatpush1.bf16.msra.mxu0 %v1055
        %1280 = vmatprep.subr.bf16.mxu0 %v1169
        %1281 = vmatpush1.bf16.msra.mxu0 %v1166
        %1282 = vmatprep.subr.bf16.mxu0 0
        %1283 = vmatpush1.bf16.msra.mxu0 0
        %1284 = vmatprep.subr.bf16.mxu0 0
        %1285 = vmatpush1.bf16.msra.mxu0 0
        %1286 = vmatprep.subr.bf16.mxu0 0
        %1287 = vmatpush1.bf16.msra.mxu0 0
        %1288 = vmatprep.mubr.bf16.mxu0 %v1150
        %1289 = vmatmul.mubr.bf16.gmra.mrb[0].mxu0 %v560
        %v1290 = vpop.f32.mrb[0].mxu0
        %v1291 = vadd.f32 %v683, %v1290
        %v1292 = vpop.f32.mrb[0].mxu0
        %v1293 = vadd.f32 %v687, %v1292
        %v1294 = vpop.f32.mrb[0].mxu0
        %v1295 = vpop.f32.mrb[0].mxu0
        %1296 = vdwg.mxu0
        %1297 = vmatprep.subr.bf16.mxu0 0
        %1298 = vmatpush1.bf16.msra.mxu0 %v980
        %1299 = vmatprep.subr.bf16.mxu0 0
        %1300 = vmatpush1.bf16.msra.mxu0 %v987
        %1301 = vmatprep.subr.bf16.mxu0 0
        %1302 = vmatpush1.bf16.msra.mxu0 %v994
        %1303 = vmatprep.subr.bf16.mxu0 0
        %1304 = vmatpush1.bf16.msra.mxu0 %v1001
        %1305 = vmatprep.subr.bf16.mxu0 0
        %1306 = vmatpush1.bf16.msra.mxu0 %v1008
        %1307 = vmatprep.subr.bf16.mxu0 0
        %1308 = vmatpush1.bf16.msra.mxu0 %v1015
        %1309 = vmatprep.subr.bf16.mxu0 0
        %1310 = vmatpush1.bf16.msra.mxu0 %v1022
        %1311 = vmatprep.subr.bf16.mxu0 0
        %1312 = vmatpush1.bf16.msra.mxu0 %v1029
        %1313 = vmatprep.subr.bf16.mxu0 0
        %1314 = vmatpush1.bf16.msra.mxu0 %v1036
        %1315 = vmatprep.subr.bf16.mxu0 0
        %1316 = vmatpush1.bf16.msra.mxu0 %v1043
        %1317 = vmatprep.subr.bf16.mxu0 0
        %1318 = vmatpush1.bf16.msra.mxu0 %v1050
        %1319 = vmatprep.subr.bf16.mxu0 0
        %1320 = vmatpush1.bf16.msra.mxu0 %v1057
        %1321 = vmatprep.subr.bf16.mxu0 0
        %1322 = vmatpush1.bf16.msra.mxu0 %v1172
        %1323 = vmatprep.subr.bf16.mxu0 0
        %1324 = vmatpush1.bf16.msra.mxu0 0
        %1325 = vmatprep.subr.bf16.mxu0 0
        %1326 = vmatpush1.bf16.msra.mxu0 0
        %1327 = vmatprep.subr.bf16.mxu0 0
        %1328 = vmatpush1.bf16.msra.mxu0 0
        %1329 = vmatprep.mubr.bf16.mxu0 %v1150
        %1330 = vmatmul.mubr.bf16.gmra.mrb[0].mxu0 %v560
        %v1331 = vpop.f32.mrb[0].mxu0
        %v1332 = vadd.f32 %v691, %v1331
        %v1333 = vpop.f32.mrb[0].mxu0
        %v1334 = vpop.f32.mrb[0].mxu0
        %v1335 = vpop.f32.mrb[0].mxu0
        %1336 = vdwg.mxu0
        %v1337 = vxor.u32 %v1209, 2147483648
        %v1338 = vxor.u32 %v1211, 2147483648
        %v1339 = vxor.u32 %v1250, 2147483648
        %v1340 = vxor.u32 %v1252, 2147483648
        %v1341 = vxor.u32 %v1291, 2147483648
        %v1342 = vxor.u32 %v1293, 2147483648
        %v1343 = vxor.u32 %v1332, 2147483648
        %v1344 = vmul.f32 %v1337, 1.442695
        %v1345 = vpow.pop %v1344
        %v1346 = vmul.f32 %v1338, 1.442695
        %v1347 = vpow.pop %v1346
        %v1348 = vmul.f32 %v1339, 1.442695
        %v1349 = vpow.pop %v1348
        %v1350 = vmul.f32 %v1340, 1.442695
        %v1351 = vpow.pop %v1350
        %v1352 = vmul.f32 %v1341, 1.442695
        %v1353 = vpow.pop %v1352
        %v1354 = vmul.f32 %v1342, 1.442695
        %v1355 = vpow.pop %v1354
        %v1356 = vmul.f32 %v1343, 1.442695
        %v1357 = vpow.pop %v1356
        %v1358 = vadd.f32 %v1345, 1.0
        %v1359 = vadd.f32 %v1347, 1.0
        %v1360 = vadd.f32 %v1349, 1.0
        %v1361 = vadd.f32 %v1351, 1.0
        %v1362 = vadd.f32 %v1353, 1.0
        %v1363 = vadd.f32 %v1355, 1.0
        %v1364 = vadd.f32 %v1357, 1.0
        %v1365 = vrcp.pop %v1358
        %v1366 = vmul.f32 1.0, %v1365
        %v1367 = vrcp.pop %v1359
        %v1368 = vmul.f32 1.0, %v1367
        %v1369 = vrcp.pop %v1360
        %v1370 = vmul.f32 1.0, %v1369
        %v1371 = vrcp.pop %v1361
        %v1372 = vmul.f32 1.0, %v1371
        %v1373 = vrcp.pop %v1362
        %v1374 = vmul.f32 1.0, %v1373
        %v1375 = vrcp.pop %v1363
        %v1376 = vmul.f32 1.0, %v1375
        %v1377 = vrcp.pop %v1364
        %v1378 = vmul.f32 1.0, %v1377
        %1379 = vst [vmem:[%s297] sm:$0xff] %v1366
        %1380 = vst [vmem:[%s297 + $0x8] sm:$0xff] %v1368
        %1381 = vst [vmem:[%s297 + $0x10] sm:$0xff] %v1370
        %1382 = vst [vmem:[%s297 + $0x18] sm:$0xff] %v1372
        %1383 = vst [vmem:[%s297 + $0x20] sm:$0xff] %v1374
        %1384 = vst [vmem:[%s297 + $0x28] sm:$0xff] %v1376
        %vm1385 = vcmask 130048
        %1386 = vst.msk [vmem:[%s297 + $0x30] sm:$0xff] %vm1385, %v1378
        %s1387 = sand.u32 %s187, 1
        %s1388 = scalar_lea.sflag [#allocation4], %s1387
        %s1389 = sand.u32 %s187, 1
        %s1390 = smul.addr %s1389, 56
        %s1391 = scalar_lea.vmem [#allocation5], %s1390
        // Predicated region
        $region53: #{_forward_batched.1} parent=47 // pred_check
          %p1392 = pneg %p197
        $region54: #{_forward_batched.1} parent=47 // pred_check_branch
          %1394 = sbr.rel (%p1392) target = $region56
        $region55: #{_forward_batched.1} parent=47 // pred_region
          %s1396 = ssub.s32 896, 896
          %1397 = vsyncadd %s1388, %s1396
          %s1398 = smul.addr %s22, 7
          %s1399 = smul.addr %s1398, 128
          %s1400 = scalar_lea.hbm %s7, %s1399
          %s1402 = sshll.u32 %s1391, 4
          %s1403 = int_to_ptr.vmem [resolvable:$true] %s1402
          %1405 = dma.vmem_to_hbm [thread:$0]  %s1403, 896, %s1400, %s1388
        $region56: #{_forward_batched.1} parent=47 // pred_fallthru
          _
      $region48: #{_forward_batched.1} parent=5 // pred_fallthru
        _
      %p1406 = scmp.le.s32.totalorder 2, %s17
      // Predicated region
      $region57: #{_forward_batched.1} parent=5 // pred_check
        %p1407 = pneg %p1406
      $region58: #{_forward_batched.1} parent=5 // pred_check_branch
        %1409 = sbr.rel (%p1407) target = $region60
      $region59: #{_forward_batched.1} parent=5 // pred_region
        %s1410 = ssub.s32 %s17, 2
        // Predicated region
        $region61: #{_forward_batched.1} parent=59 // pred_check
          %p1411 = pneg %p203
        $region62: #{_forward_batched.1} parent=59 // pred_check_branch
          %1413 = sbr.rel (%p1411) target = $region64
        $region63: #{_forward_batched.1} parent=59 // pred_region
          %s1414 = sand.u32 %s188, 1
          %s1415 = scalar_lea.sflag [#allocation4], %s1414
          %s1416 = sand.u32 %s188, 1
          %s1417 = smul.addr %s1416, 56
          %s1418 = scalar_lea.vmem [#allocation5], %s1417
          %1419 = dma.done %s1415, 896
        $region64: #{_forward_batched.1} parent=59 // pred_fallthru
          _
      $region60: #{_forward_batched.1} parent=5 // pred_fallthru
        _
    $region6: #{_forward_batched.1} parent=1 // loop_footer
      %s21 = sadd.s32 1, %s17
    $region7: #{_forward_batched.1} parent=1 // loop_footer_branch
      %16 = sbr.rel target = $region3
    $region8: #{_forward_batched.1} parent=1 // loop_exit
      _
    %1420 = vsyncpa [#allocation3], 1
    %s1421 = scalar_lea.sflag [#allocation3], 1
    %1422 = vsyncpa %s1421, 1
    %1423 = vsyncpa [#allocation4], 1
    %s1424 = scalar_lea.sflag [#allocation4], 1
    %1425 = vsyncpa %s1424, 1

</llo_original>
